<compile_context>
chip_gen: v7x
topology: tpu7x:2x2x1
jax: 0.10.0
libtpu: 0.0.40
codegen_flags: <defaults>
</compile_context>

<pallas_src>
import jax
import jax.numpy as jnp
from jax.experimental import pallas as pl
from jax.experimental.pallas import tpu as pltpu

BN_EPS = 1e-3   # batchnorm_eps default of the module
LANE = 128


def _softplus(v):
    # numerically-stable softplus, matches F.softplus(beta=1)
    return jnp.maximum(v, 0.0) + jnp.log1p(jnp.exp(-jnp.abs(v)))


def _round_up(n, m):
    return ((n + m - 1) // m) * m


def spfa_kernel(
    x_ref,        # [B, V]
    w1_ref,       # [V, H1]
    w2_ref,       # [H1, H2]
    wmulv_ref,    # [H2, 2T]   (Wmu | Wlv fused)
    spwdec_ref,   # [T, V]     softplus(Wdec), precomputed in wrapper
    rows_ref,     # [8, ROWW]  b1|b2|bmu,blv|gmu,glv|betamu,betalv|sp(beta)|beta_bias|pad
    eps_ref,      # [B, T]     reparameterization noise
    recon_ref,    # [B, V]             output
    packed_ref,   # [B, PACK_W]        output: mu | logvar | s | pred | zero-pad
):
    B = x_ref.shape[0]
    H1 = w1_ref.shape[1]
    H2 = w2_ref.shape[1]
    T2 = wmulv_ref.shape[1]
    T = T2 // 2
    pack_w = packed_ref.shape[1]

    b1 = rows_ref[0:1, 0:H1]
    b2 = rows_ref[1:2, 0:H2]
    b_mulv = rows_ref[2:3, 0:T2]
    g_mulv = rows_ref[3:4, 0:T2]
    beta_mulv = rows_ref[4:5, 0:T2]
    sp_beta = rows_ref[5:6, 0:T]
    beta_bias = rows_ref[6:7, 0:1]

    # ---- Encoder hidden path (dropout -> identity) ----
    x = x_ref[...]
    h = _softplus(jnp.dot(x, w1_ref[...], preferred_element_type=jnp.float32) + b1)
    h = _softplus(jnp.dot(h, w2_ref[...], preferred_element_type=jnp.float32) + b2)

    # ---- Fused mu|logvar linear + BatchNorm1d (training-mode batch stats) ----
    z = jnp.dot(h, wmulv_ref[...], preferred_element_type=jnp.float32) + b_mulv
    m = jnp.mean(z, axis=0, keepdims=True)
    var = jnp.mean((z - m) ** 2, axis=0, keepdims=True)
    zn = g_mulv * (z - m) * jax.lax.rsqrt(var + BN_EPS) + beta_mulv   # [B, 2T] = mu|logvar

    mu = zn[:, :T]
    logvar = zn[:, T:]

    # ---- Reparameterize + softplus ----
    std = jnp.exp(0.5 * logvar)
    s = _softplus(mu + eps_ref[...] * std)

    # ---- Decoder (softplus(Wdec) precomputed; dropout -> identity) ----
    recon_ref[...] = jnp.dot(s, spwdec_ref[...], preferred_element_type=jnp.float32)

    # ---- Beta head: s @ softplus(beta) + bias ----
    pred = jnp.sum(s * sp_beta, axis=-1, keepdims=True) + beta_bias   # [B, 1]

    # ---- Single dense lane-packed store: mu | logvar | s | pred | pad ----
    parts = [zn, s, pred]
    pad_w = pack_w - (T2 + T + 1)
    if pad_w > 0:
        parts.append(jnp.zeros((B, pad_w), jnp.float32))
    packed_ref[...] = jnp.concatenate(parts, axis=-1)


def prepare_params(params):
    """Per-weight-update preprocessing: fuse heads, pre-activate decoder/beta,
    pack every [1, N] row parameter (incl. beta_bias) into one [8, ROWW] array."""
    H1 = params["w1"].shape[1]
    H2 = params["w2"].shape[1]
    T = params["beta"].shape[-1]
    roww = _round_up(max(H1, H2, 2 * T, LANE), LANE)

    def row(v):
        v = jnp.asarray(v, jnp.float32).reshape(1, -1)
        return jnp.pad(v, ((0, 0), (0, roww - v.shape[1])))

    rows = jnp.concatenate(
        [
            row(params["b1"]),
            row(params["b2"]),
            row(jnp.concatenate([params["bmu"].reshape(-1), params["blv"].reshape(-1)])),
            row(jnp.concatenate([params["gmu"].reshape(-1), params["glv"].reshape(-1)])),
            row(jnp.concatenate([params["betamu"].reshape(-1), params["betalv"].reshape(-1)])),
            row(_softplus(params["beta"])),
            row(params["beta_bias"]),
            jnp.zeros((1, roww), jnp.float32),   # sublane pad -> [8, roww]
        ],
        axis=0,
    )

    return {
        "w1": jnp.asarray(params["w1"], jnp.float32),
        "w2": jnp.asarray(params["w2"], jnp.float32),
        "wmulv": jnp.concatenate([params["wmu"], params["wlv"]], axis=1).astype(jnp.float32),
        "sp_wdec": _softplus(params["wdec"]).astype(jnp.float32),
        "rows": rows,
    }


@jax.jit
def spfa_forward(x, kp, eps_noise):
    B, V = x.shape
    T = kp["wmulv"].shape[1] // 2
    pack_w = _round_up(3 * T + 1, LANE)

    vmem = pl.BlockSpec(memory_space=pltpu.MemorySpace.VMEM)

    recon, packed = pl.pallas_call(
        spfa_kernel,
        out_shape=(
            jax.ShapeDtypeStruct((B, V), jnp.float32),       # recon
            jax.ShapeDtypeStruct((B, pack_w), jnp.float32),  # mu | logvar | s | pred | pad
        ),
        in_specs=[vmem] * 7,
        out_specs=(vmem, vmem),
    )(
        x,
        kp["w1"], kp["w2"], kp["wmulv"], kp["sp_wdec"], kp["rows"],
        eps_noise,
    )

    mu = packed[:, 0:T]
    logvar = packed[:, T:2 * T]
    s = packed[:, 2 * T:3 * T]
    pred = packed[:, 3 * T]
    return recon, mu, logvar, pred, s


def init_params(key, vocab, topics, hidden1, hidden2, beta_bias=50.0):
    ks = jax.random.split(key, 8)
    u = lambda k, shape, sc: (jax.random.uniform(k, shape, jnp.float32) - 0.5) * 2 * sc
    return {
        "w1": u(ks[0], (vocab, hidden1), 0.1),
        "b1": u(ks[1], (1, hidden1), 0.1),
        "w2": u(ks[2], (hidden1, hidden2), 0.1),
        "b2": u(ks[3], (1, hidden2), 0.1),
        "wmu": u(ks[4], (hidden2, topics), 0.1),
        "bmu": jnp.zeros((1, topics), jnp.float32),
        "gmu": jnp.ones((1, topics), jnp.float32),
        "betamu": jnp.zeros((1, topics), jnp.float32),
        "wlv": u(ks[5], (hidden2, topics), 0.1),
        "blv": jnp.zeros((1, topics), jnp.float32),
        "glv": jnp.ones((1, topics), jnp.float32),
        "betalv": jnp.zeros((1, topics), jnp.float32),
        "wdec": jax.random.uniform(ks[6], (topics, vocab), jnp.float32),  # torch.rand
        "beta": jax.random.uniform(ks[7], (1, topics), jnp.float32),      # torch.rand
        "beta_bias": jnp.full((1, 1), beta_bias, jnp.float32),
    }


def spfa_reference(x, p, eps_noise):
    """Pure-JAX reference (un-fused, un-packed) for correctness checking."""
    sp = _softplus
    h = sp(x @ p["w1"] + p["b1"])
    h = sp(h @ p["w2"] + p["b2"])

    def bn(z, g, b):
        m = jnp.mean(z, axis=0, keepdims=True)
        v = jnp.mean((z - m) ** 2, axis=0, keepdims=True)
        return g * (z - m) / jnp.sqrt(v + BN_EPS) + b

    mu = bn(h @ p["wmu"] + p["bmu"], p["gmu"], p["betamu"])
    logvar = bn(h @ p["wlv"] + p["blv"], p["glv"], p["betalv"])
    s = sp(mu + eps_noise * jnp.exp(0.5 * logvar))
    recon = s @ sp(p["wdec"])
    pred = s @ sp(p["beta"][0]) + p["beta_bias"][0, 0]
    return recon, mu, logvar, pred, s


if __name__ == "__main__":
    import numpy as np

    B, VOCAB, TOPICS, H1, H2 = 64, 128, 16, 64, 32

    key = jax.random.PRNGKey(0)
    k_params, k_x, k_eps = jax.random.split(key, 3)

    params = init_params(k_params, VOCAB, TOPICS, H1, H2)
    kernel_params = prepare_params(params)          # once per weight update

    # batch of "counts"-like input (deterministic)
    x = jnp.floor(6.0 * jax.random.uniform(k_x, (B, VOCAB), jnp.float32))
    eps_noise = jax.random.normal(k_eps, (B, TOPICS), jnp.float32)

    recon, mu, logvar, pred, s = jax.block_until_ready(
        spfa_forward(x, kernel_params, eps_noise)
    )

    ref = spfa_reference(x, params, eps_noise)
    for got, want in zip((recon, mu, logvar, pred, s), ref):
        np.testing.assert_allclose(np.asarray(got), np.asarray(want), rtol=1e-4, atol=1e-4)

    assert recon.shape == (B, VOCAB) and mu.shape == (B, TOPICS)
    assert logvar.shape == (B, TOPICS) and pred.shape == (B,) and s.shape == (B, TOPICS)
    print("KERNEL_OK")
</pallas_src>

<mosaic_0001>
module attributes {stable_mosaic.version = 11 : i64} {
  func.func @spfa_kernel(%arg0: memref<64x128xf32, #tpu.memory_space<vmem>>, %arg1: memref<128x64xf32, #tpu.memory_space<vmem>>, %arg2: memref<64x32xf32, #tpu.memory_space<vmem>>, %arg3: memref<32x32xf32, #tpu.memory_space<vmem>>, %arg4: memref<16x128xf32, #tpu.memory_space<vmem>>, %arg5: memref<8x128xf32, #tpu.memory_space<vmem>>, %arg6: memref<64x16xf32, #tpu.memory_space<vmem>>, %arg7: memref<64x128xf32, #tpu.memory_space<vmem>>, %arg8: memref<64x128xf32, #tpu.memory_space<vmem>>) attributes {dimension_semantics = [], scalar_prefetch = 0 : i64, scratch_operands = 0 : i64, tpu.core_type = #tpu.core_type<tc>} {
    %c0 = arith.constant 0 : index
    %c0_0 = arith.constant 0 : index
    %0 = vector.load %arg5[%c0, %c0_0] : memref<8x128xf32, #tpu.memory_space<vmem>>, vector<1x64xf32>
    %c1 = arith.constant 1 : index
    %c0_1 = arith.constant 0 : index
    %1 = vector.load %arg5[%c1, %c0_1] : memref<8x128xf32, #tpu.memory_space<vmem>>, vector<1x32xf32>
    %c2 = arith.constant 2 : index
    %c0_2 = arith.constant 0 : index
    %2 = vector.load %arg5[%c2, %c0_2] : memref<8x128xf32, #tpu.memory_space<vmem>>, vector<1x32xf32>
    %c3 = arith.constant 3 : index
    %c0_3 = arith.constant 0 : index
    %3 = vector.load %arg5[%c3, %c0_3] : memref<8x128xf32, #tpu.memory_space<vmem>>, vector<1x32xf32>
    %c4 = arith.constant 4 : index
    %c0_4 = arith.constant 0 : index
    %4 = vector.load %arg5[%c4, %c0_4] : memref<8x128xf32, #tpu.memory_space<vmem>>, vector<1x32xf32>
    %c5 = arith.constant 5 : index
    %c0_5 = arith.constant 0 : index
    %5 = vector.load %arg5[%c5, %c0_5] : memref<8x128xf32, #tpu.memory_space<vmem>>, vector<1x16xf32>
    %c6 = arith.constant 6 : index
    %c0_6 = arith.constant 0 : index
    %6 = vector.load %arg5[%c6, %c0_6] : memref<8x128xf32, #tpu.memory_space<vmem>>, vector<1x1xf32>
    %c0_7 = arith.constant 0 : index
    %c0_8 = arith.constant 0 : index
    %7 = vector.load %arg0[%c0_7, %c0_8] : memref<64x128xf32, #tpu.memory_space<vmem>>, vector<64x128xf32>
    %c0_9 = arith.constant 0 : index
    %c0_10 = arith.constant 0 : index
    %8 = vector.load %arg1[%c0_9, %c0_10] : memref<128x64xf32, #tpu.memory_space<vmem>>, vector<128x64xf32>
    %cst = arith.constant dense<0.000000e+00> : vector<64x64xf32>
    %9 = tpu.matmul %7, %8, %cst {dimension_numbers = #tpu.dot_dimension_numbers<[1], [0], [0], [1], [0, 0, 1, 1], [], []>} : vector<64x128xf32>, vector<128x64xf32>, vector<64x64xf32> -> vector<64x64xf32>
    %10 = vector.broadcast %0 : vector<1x64xf32> to vector<64x64xf32>
    %11 = arith.addf %9, %10 : vector<64x64xf32>
    %cst_11 = arith.constant 0.000000e+00 : f32
    %12 = vector.broadcast %cst_11 : f32 to vector<64x64xf32>
    %13 = arith.maximumf %11, %12 : vector<64x64xf32>
    %14 = math.absf %11 : vector<64x64xf32>
    %cst_12 = arith.constant 0.000000e+00 : f32
    %15 = vector.broadcast %cst_12 : f32 to vector<64x64xf32>
    %16 = arith.subf %15, %14 : vector<64x64xf32>
    %17 = math.exp %16 : vector<64x64xf32>
    %18 = math.log1p %17 : vector<64x64xf32>
    %19 = arith.addf %13, %18 : vector<64x64xf32>
    %c0_13 = arith.constant 0 : index
    %c0_14 = arith.constant 0 : index
    %20 = vector.load %arg2[%c0_13, %c0_14] : memref<64x32xf32, #tpu.memory_space<vmem>>, vector<64x32xf32>
    %cst_15 = arith.constant dense<0.000000e+00> : vector<64x32xf32>
    %21 = tpu.matmul %19, %20, %cst_15 {dimension_numbers = #tpu.dot_dimension_numbers<[1], [0], [0], [1], [0, 0, 1, 1], [], []>} : vector<64x64xf32>, vector<64x32xf32>, vector<64x32xf32> -> vector<64x32xf32>
    %22 = vector.broadcast %1 : vector<1x32xf32> to vector<64x32xf32>
    %23 = arith.addf %21, %22 : vector<64x32xf32>
    %cst_16 = arith.constant 0.000000e+00 : f32
    %24 = vector.broadcast %cst_16 : f32 to vector<64x32xf32>
    %25 = arith.maximumf %23, %24 : vector<64x32xf32>
    %26 = math.absf %23 : vector<64x32xf32>
    %cst_17 = arith.constant 0.000000e+00 : f32
    %27 = vector.broadcast %cst_17 : f32 to vector<64x32xf32>
    %28 = arith.subf %27, %26 : vector<64x32xf32>
    %29 = math.exp %28 : vector<64x32xf32>
    %30 = math.log1p %29 : vector<64x32xf32>
    %31 = arith.addf %25, %30 : vector<64x32xf32>
    %c0_18 = arith.constant 0 : index
    %c0_19 = arith.constant 0 : index
    %32 = vector.load %arg3[%c0_18, %c0_19] : memref<32x32xf32, #tpu.memory_space<vmem>>, vector<32x32xf32>
    %cst_20 = arith.constant dense<0.000000e+00> : vector<64x32xf32>
    %33 = tpu.matmul %31, %32, %cst_20 {dimension_numbers = #tpu.dot_dimension_numbers<[1], [0], [0], [1], [0, 0, 1, 1], [], []>} : vector<64x32xf32>, vector<32x32xf32>, vector<64x32xf32> -> vector<64x32xf32>
    %34 = vector.broadcast %2 : vector<1x32xf32> to vector<64x32xf32>
    %35 = arith.addf %33, %34 : vector<64x32xf32>
    %cst_21 = arith.constant dense<0.000000e+00> : vector<32xf32>
    %36 = vector.multi_reduction <add>, %35, %cst_21 [0] : vector<64x32xf32> to vector<32xf32>
    %37 = vector.shape_cast %36 : vector<32xf32> to vector<1x32xf32>
    %cst_22 = arith.constant 6.400000e+01 : f32
    %38 = vector.broadcast %cst_22 : f32 to vector<1x32xf32>
    %39 = arith.divf %37, %38 : vector<1x32xf32>
    %40 = vector.broadcast %39 : vector<1x32xf32> to vector<64x32xf32>
    %41 = arith.subf %35, %40 : vector<64x32xf32>
    %42 = arith.mulf %41, %41 : vector<64x32xf32>
    %cst_23 = arith.constant dense<0.000000e+00> : vector<32xf32>
    %43 = vector.multi_reduction <add>, %42, %cst_23 [0] : vector<64x32xf32> to vector<32xf32>
    %44 = vector.shape_cast %43 : vector<32xf32> to vector<1x32xf32>
    %cst_24 = arith.constant 6.400000e+01 : f32
    %45 = vector.broadcast %cst_24 : f32 to vector<1x32xf32>
    %46 = arith.divf %44, %45 : vector<1x32xf32>
    %47 = vector.broadcast %39 : vector<1x32xf32> to vector<64x32xf32>
    %48 = arith.subf %35, %47 : vector<64x32xf32>
    %49 = vector.broadcast %3 : vector<1x32xf32> to vector<64x32xf32>
    %50 = arith.mulf %49, %48 : vector<64x32xf32>
    %cst_25 = arith.constant 1.000000e-03 : f32
    %51 = vector.broadcast %cst_25 : f32 to vector<1x32xf32>
    %52 = arith.addf %46, %51 : vector<1x32xf32>
    %53 = math.rsqrt %52 : vector<1x32xf32>
    %54 = vector.broadcast %53 : vector<1x32xf32> to vector<64x32xf32>
    %55 = arith.mulf %50, %54 : vector<64x32xf32>
    %56 = vector.broadcast %4 : vector<1x32xf32> to vector<64x32xf32>
    %57 = arith.addf %55, %56 : vector<64x32xf32>
    %58 = vector.extract_strided_slice %57 {offsets = [0, 0], sizes = [64, 16], strides = [1, 1]} : vector<64x32xf32> to vector<64x16xf32>
    %59 = vector.extract_strided_slice %57 {offsets = [0, 16], sizes = [64, 16], strides = [1, 1]} : vector<64x32xf32> to vector<64x16xf32>
    %cst_26 = arith.constant 5.000000e-01 : f32
    %60 = vector.broadcast %cst_26 : f32 to vector<64x16xf32>
    %61 = arith.mulf %60, %59 : vector<64x16xf32>
    %62 = math.exp %61 : vector<64x16xf32>
    %c0_27 = arith.constant 0 : index
    %c0_28 = arith.constant 0 : index
    %63 = vector.load %arg6[%c0_27, %c0_28] : memref<64x16xf32, #tpu.memory_space<vmem>>, vector<64x16xf32>
    %64 = arith.mulf %63, %62 : vector<64x16xf32>
    %65 = arith.addf %58, %64 : vector<64x16xf32>
    %cst_29 = arith.constant 0.000000e+00 : f32
    %66 = vector.broadcast %cst_29 : f32 to vector<64x16xf32>
    %67 = arith.maximumf %65, %66 : vector<64x16xf32>
    %68 = math.absf %65 : vector<64x16xf32>
    %cst_30 = arith.constant 0.000000e+00 : f32
    %69 = vector.broadcast %cst_30 : f32 to vector<64x16xf32>
    %70 = arith.subf %69, %68 : vector<64x16xf32>
    %71 = math.exp %70 : vector<64x16xf32>
    %72 = math.log1p %71 : vector<64x16xf32>
    %73 = arith.addf %67, %72 : vector<64x16xf32>
    %c0_31 = arith.constant 0 : index
    %c0_32 = arith.constant 0 : index
    %74 = vector.load %arg4[%c0_31, %c0_32] : memref<16x128xf32, #tpu.memory_space<vmem>>, vector<16x128xf32>
    %cst_33 = arith.constant dense<0.000000e+00> : vector<64x128xf32>
    %75 = tpu.matmul %73, %74, %cst_33 {dimension_numbers = #tpu.dot_dimension_numbers<[1], [0], [0], [1], [0, 0, 1, 1], [], []>} : vector<64x16xf32>, vector<16x128xf32>, vector<64x128xf32> -> vector<64x128xf32>
    %c0_34 = arith.constant 0 : index
    %c0_35 = arith.constant 0 : index
    %76 = vector.load %arg7[%c0_34, %c0_35] : memref<64x128xf32, #tpu.memory_space<vmem>>, vector<64x128xf32>
    tpu.vector_store %arg7[%c0_34, %c0_35], %75 {strides = array<i32>} : memref<64x128xf32, #tpu.memory_space<vmem>>, vector<64x128xf32>,
    %77 = vector.broadcast %5 : vector<1x16xf32> to vector<64x16xf32>
    %78 = arith.mulf %73, %77 : vector<64x16xf32>
    %cst_36 = arith.constant dense<0.000000e+00> : vector<64xf32>
    %79 = vector.multi_reduction <add>, %78, %cst_36 [1] : vector<64x16xf32> to vector<64xf32>
    %80 = vector.shape_cast %79 : vector<64xf32> to vector<64x1xf32>
    %81 = vector.broadcast %6 : vector<1x1xf32> to vector<64x1xf32>
    %82 = arith.addf %80, %81 : vector<64x1xf32>
    %cst_37 = arith.constant 0.000000e+00 : f32
    %83 = vector.broadcast %cst_37 : f32 to vector<64x79xf32>
    %84 = tpu.concatenate %57, %73, %82, %83 in 1 : vector<64x32xf32>, vector<64x16xf32>, vector<64x1xf32>, vector<64x79xf32> -> vector<64x128xf32>
    %c0_38 = arith.constant 0 : index
    %c0_39 = arith.constant 0 : index
    %85 = vector.load %arg8[%c0_38, %c0_39] : memref<64x128xf32, #tpu.memory_space<vmem>>, vector<64x128xf32>
    tpu.vector_store %arg8[%c0_38, %c0_39], %84 {strides = array<i32>} : memref<64x128xf32, #tpu.memory_space<vmem>>, vector<64x128xf32>,
    return
  }
}

</mosaic_0001>

<llo_original>
// kernel: spfa_forward.1
$region0: #{spfa_forward.1}
  #allocation0 [shape = 'u32[]', space=smem, size = 0x4, offset = 0x4, fixed_abs, tag = 'smem constant byte address 0x4 - core index']
  #allocation1 [shape = 'u32[144,128]{1,0:T(1,128)}', space=vmem, size = 0x12000, scoped, tag = 'internal scratch']
  %s0 = inlined_call_operand.vmem [shape: f32[64,128], index: 0, kind: input, shape index: {}]
  %s1 = inlined_call_operand.vmem [shape: f32[128,64], index: 1, kind: input, shape index: {}]
  %s2 = inlined_call_operand.vmem [shape: f32[64,32], index: 2, kind: input, shape index: {}]
  %s3 = inlined_call_operand.vmem [shape: f32[32,32], index: 3, kind: input, shape index: {}]
  %s4 = inlined_call_operand.vmem [shape: f32[16,128], index: 4, kind: input, shape index: {}]
  %s5 = inlined_call_operand.vmem [shape: f32[8,128], index: 5, kind: input, shape index: {}]
  %s6 = inlined_call_operand.vmem [shape: f32[64,16], index: 6, kind: input, shape index: {}]
  %s7 = inlined_call_operand.hbm [shape: f32[64,128], index: 7, kind: output, shape index: {0}]
  %s8 = inlined_call_operand.vmem [shape: f32[64,128], index: 8, kind: output, shape index: {1}]
  %9 = xla_tuple %s7, %s8
  %s10 = sld [smem:[#allocation0]]
  $region46: #{spfa_forward.1} parent=0
    _
  %s12 = ssub.s32 1, %s10
  %s13 = scalar_select 0, %s12, %s10
  $region1: #{spfa_forward.1} parent=0
    #allocation2 [shape = 'u8[32768]{0}', space=vmem, size = 0x8000, scoped, tag = 'output window, operand 0, single buffered']
    #allocation3 [shape = 's32[1]{0}', space=sflag, size = 0x4, scoped, tag = 'scoped memory for spfa_forward.1']
    %14 = vsyncpa [#allocation3], 0
    // Predicated region
    $region2: #{spfa_forward.1} parent=1 // pred_check
      _
    $region3: #{spfa_forward.1} parent=1 // pred_check_branch
      %16 = sbr.rel (0) target = $region5
    $region4: #{spfa_forward.1} parent=1 // pred_region
      _
    $region5: #{spfa_forward.1} parent=1 // pred_fallthru
      _
    // Predicated region
    $region6: #{spfa_forward.1} parent=1 // pred_check
      _
    $region7: #{spfa_forward.1} parent=1 // pred_check_branch
      %18 = sbr.rel (0) target = $region9
    $region8: #{spfa_forward.1} parent=1 // pred_region
      _
    $region9: #{spfa_forward.1} parent=1 // pred_fallthru
      _
    // Predicated region
    $region10: #{spfa_forward.1} parent=1 // pred_check
      _
    $region11: #{spfa_forward.1} parent=1 // pred_check_branch
      %20 = sbr.rel (0) target = $region13
    $region12: #{spfa_forward.1} parent=1 // pred_region
      _
    $region13: #{spfa_forward.1} parent=1 // pred_fallthru
      _
    // Predicated region
    $region14: #{spfa_forward.1} parent=1 // pred_check
      _
    $region15: #{spfa_forward.1} parent=1 // pred_check_branch
      %22 = sbr.rel (0) target = $region17
    $region16: #{spfa_forward.1} parent=1 // pred_region
      _
    $region17: #{spfa_forward.1} parent=1 // pred_fallthru
      _
    // Predicated region
    $region18: #{spfa_forward.1} parent=1 // pred_check
      _
    $region19: #{spfa_forward.1} parent=1 // pred_check_branch
      %24 = sbr.rel (0) target = $region21
    $region20: #{spfa_forward.1} parent=1 // pred_region
      _
    $region21: #{spfa_forward.1} parent=1 // pred_fallthru
      _
    // Predicated region
    $region22: #{spfa_forward.1} parent=1 // pred_check
      _
    $region23: #{spfa_forward.1} parent=1 // pred_check_branch
      %26 = sbr.rel (0) target = $region25
    $region24: #{spfa_forward.1} parent=1 // pred_region
      _
    $region25: #{spfa_forward.1} parent=1 // pred_fallthru
      _
    // Predicated region
    $region26: #{spfa_forward.1} parent=1 // pred_check
      _
    $region27: #{spfa_forward.1} parent=1 // pred_check_branch
      %28 = sbr.rel (0) target = $region29
    $region28: #{spfa_forward.1} parent=1 // pred_region
      _
    $region29: #{spfa_forward.1} parent=1 // pred_fallthru
      _
    %v29 = vld [vmem:[%s5] sm:$0x1]
    %v30 = vld [vmem:[%s5 + $0x1] sm:$0x1]
    %v31 = vld [vmem:[%s5 + $0x2] sm:$0x1]
    %v32 = vld [vmem:[%s5 + $0x3] sm:$0x1]
    %v33 = vld [vmem:[%s5 + $0x4] sm:$0x1]
    %v34 = vld [vmem:[%s5 + $0x5] sm:$0x1]
    %v35 = vld [vmem:[%s5 + $0x6] sm:$0x1]
    %v36 = vld [vmem:[%s0] sm:$0xff]
    %v37 = vld [vmem:[%s0 + $0x8] sm:$0xff]
    %v38 = vld [vmem:[%s0 + $0x10] sm:$0xff]
    %v39 = vld [vmem:[%s0 + $0x18] sm:$0xff]
    %v40 = vld [vmem:[%s0 + $0x20] sm:$0xff]
    %v41 = vld [vmem:[%s0 + $0x28] sm:$0xff]
    %v42 = vld [vmem:[%s0 + $0x30] sm:$0xff]
    %v43 = vld [vmem:[%s0 + $0x38] sm:$0xff]
    %v44 = vld [vmem:[%s1] sm:$0xff]
    %v45 = vld [vmem:[%s1 + $0x8] sm:$0xff]
    %v46 = vld [vmem:[%s1 + $0x10] sm:$0xff]
    %v47 = vld [vmem:[%s1 + $0x18] sm:$0xff]
    %v48 = vld [vmem:[%s1 + $0x20] sm:$0xff]
    %v49 = vld [vmem:[%s1 + $0x28] sm:$0xff]
    %v50 = vld [vmem:[%s1 + $0x30] sm:$0xff]
    %v51 = vld [vmem:[%s1 + $0x38] sm:$0xff]
    %v52 = vld [vmem:[%s1 + $0x40] sm:$0xff]
    %v53 = vld [vmem:[%s1 + $0x48] sm:$0xff]
    %v54 = vld [vmem:[%s1 + $0x50] sm:$0xff]
    %v55 = vld [vmem:[%s1 + $0x58] sm:$0xff]
    %v56 = vld [vmem:[%s1 + $0x60] sm:$0xff]
    %v57 = vld [vmem:[%s1 + $0x68] sm:$0xff]
    %v58 = vld [vmem:[%s1 + $0x70] sm:$0xff]
    %v59 = vld [vmem:[%s1 + $0x78] sm:$0xff]
    %v60 = vlaneseq
    %v61 = vshrl.u32 %v60, 7
    %v62 = vsub.s32 0, %v61
    %v63 = vrot.slane %v29, %v62
    %64 = vmatprep.subr.mxu0 0.0
    %65 = vmatpush1.msra.mxu0 %v44
    %66 = vmatprep.subr.mxu0 0.0
    %67 = vmatpush1.msra.mxu0 %v45
    %68 = vmatprep.subr.mxu0 0.0
    %69 = vmatpush1.msra.mxu0 %v46
    %70 = vmatprep.subr.mxu0 0.0
    %71 = vmatpush1.msra.mxu0 %v47
    %72 = vmatprep.subr.mxu0 0.0
    %73 = vmatpush1.msra.mxu0 %v48
    %74 = vmatprep.subr.mxu0 0.0
    %75 = vmatpush1.msra.mxu0 %v49
    %76 = vmatprep.subr.mxu0 0.0
    %77 = vmatpush1.msra.mxu0 %v50
    %78 = vmatprep.subr.mxu0 0.0
    %79 = vmatpush1.msra.mxu0 %v51
    %80 = vmatprep.subr.mxu0 0.0
    %81 = vmatpush1.msra.mxu0 %v52
    %82 = vmatprep.subr.mxu0 0.0
    %83 = vmatpush1.msra.mxu0 %v53
    %84 = vmatprep.subr.mxu0 0.0
    %85 = vmatpush1.msra.mxu0 %v54
    %86 = vmatprep.subr.mxu0 0.0
    %87 = vmatpush1.msra.mxu0 %v55
    %88 = vmatprep.subr.mxu0 0.0
    %89 = vmatpush1.msra.mxu0 %v56
    %90 = vmatprep.subr.mxu0 0.0
    %91 = vmatpush1.msra.mxu0 %v57
    %92 = vmatprep.subr.mxu0 0.0
    %93 = vmatpush1.msra.mxu0 %v58
    %94 = vmatprep.subr.mxu0 0.0
    %95 = vmatpush1.msra.mxu0 %v59
    %96 = vmatprep.subr.mxu0 0.0
    %97 = vmatpush1.msra.mxu0 0.0
    %98 = vmatprep.subr.mxu0 0.0
    %99 = vmatpush1.msra.mxu0 0.0
    %100 = vmatprep.subr.mxu0 0.0
    %101 = vmatpush1.msra.mxu0 0.0
    %102 = vmatprep.subr.mxu0 0.0
    %103 = vmatpush1.msra.mxu0 0.0
    %104 = vmatprep.subr.mxu0 0.0
    %105 = vmatpush1.msra.mxu0 0.0
    %106 = vmatprep.subr.mxu0 0.0
    %107 = vmatpush1.msra.mxu0 0.0
    %108 = vmatprep.subr.mxu0 0.0
    %109 = vmatpush1.msra.mxu0 0.0
    %110 = vmatprep.subr.mxu0 0.0
    %111 = vmatpush1.msra.mxu0 0.0
    %112 = vmatprep.subr.mxu0 0.0
    %113 = vmatpush1.msra.mxu0 0.0
    %114 = vmatprep.subr.mxu0 0.0
    %115 = vmatpush1.msra.mxu0 0.0
    %116 = vmatprep.subr.mxu0 0.0
    %117 = vmatpush1.msra.mxu0 0.0
    %118 = vmatprep.subr.mxu0 0.0
    %119 = vmatpush1.msra.mxu0 0.0
    %120 = vmatprep.subr.mxu0 0.0
    %121 = vmatpush1.msra.mxu0 0.0
    %122 = vmatprep.subr.mxu0 0.0
    %123 = vmatpush1.msra.mxu0 0.0
    %124 = vmatprep.subr.mxu0 0.0
    %125 = vmatpush1.msra.mxu0 0.0
    %126 = vmatprep.subr.mxu0 0.0
    %127 = vmatpush1.msra.mxu0 0.0
    %128 = vmatprep.mubr.f32.mxu0 0.0
    %129 = vmatmul.mubr.f32.gmra.mrb[0].mxu0 %v36
    %v130 = vpop.f32.mrb[0].mxu0
    %v131 = vadd.f32 %v63, %v130
    %v132 = vpop.f32.mrb[0].mxu0
    %133 = vmatprep.mubr.f32.mxu0 0.0
    %134 = vmatmul.mubr.f32.gmra.mrb[0].mxu0 %v37
    %v135 = vpop.f32.mrb[0].mxu0
    %v136 = vadd.f32 %v63, %v135
    %v137 = vpop.f32.mrb[0].mxu0
    %138 = vmatprep.mubr.f32.mxu0 0.0
    %139 = vmatmul.mubr.f32.gmra.mrb[0].mxu0 %v38
    %v140 = vpop.f32.mrb[0].mxu0
    %v141 = vadd.f32 %v63, %v140
    %v142 = vpop.f32.mrb[0].mxu0
    %143 = vmatprep.mubr.f32.mxu0 0.0
    %144 = vmatmul.mubr.f32.gmra.mrb[0].mxu0 %v39
    %v145 = vpop.f32.mrb[0].mxu0
    %v146 = vadd.f32 %v63, %v145
    %v147 = vpop.f32.mrb[0].mxu0
    %148 = vmatprep.mubr.f32.mxu0 0.0
    %149 = vmatmul.mubr.f32.gmra.mrb[0].mxu0 %v40
    %v150 = vpop.f32.mrb[0].mxu0
    %v151 = vadd.f32 %v63, %v150
    %v152 = vpop.f32.mrb[0].mxu0
    %153 = vmatprep.mubr.f32.mxu0 0.0
    %154 = vmatmul.mubr.f32.gmra.mrb[0].mxu0 %v41
    %v155 = vpop.f32.mrb[0].mxu0
    %v156 = vadd.f32 %v63, %v155
    %v157 = vpop.f32.mrb[0].mxu0
    %158 = vmatprep.mubr.f32.mxu0 0.0
    %159 = vmatmul.mubr.f32.gmra.mrb[0].mxu0 %v42
    %v160 = vpop.f32.mrb[0].mxu0
    %v161 = vadd.f32 %v63, %v160
    %v162 = vpop.f32.mrb[0].mxu0
    %163 = vmatprep.mubr.f32.mxu0 0.0
    %164 = vmatmul.mubr.f32.gmra.mrb[0].mxu0 %v43
    %v165 = vpop.f32.mrb[0].mxu0
    %v166 = vadd.f32 %v63, %v165
    %v167 = vpop.f32.mrb[0].mxu0
    %168 = vdwg.mxu0
    %v169 = vmax.f32 %v131, 0.0
    %v170 = vmax.f32 %v136, 0.0
    %v171 = vmax.f32 %v141, 0.0
    %v172 = vmax.f32 %v146, 0.0
    %v173 = vmax.f32 %v151, 0.0
    %v174 = vmax.f32 %v156, 0.0
    %v175 = vmax.f32 %v161, 0.0
    %v176 = vmax.f32 %v166, 0.0
    %v177 = vand.u32 2147483647, %v131
    %v178 = vand.u32 2147483647, %v136
    %v179 = vand.u32 2147483647, %v141
    %v180 = vand.u32 2147483647, %v146
    %v181 = vand.u32 2147483647, %v151
    %v182 = vand.u32 2147483647, %v156
    %v183 = vand.u32 2147483647, %v161
    %v184 = vand.u32 2147483647, %v166
    %v185 = vsub.f32 0.0, %v177
    %v186 = vsub.f32 0.0, %v178
    %v187 = vsub.f32 0.0, %v179
    %v188 = vsub.f32 0.0, %v180
    %v189 = vsub.f32 0.0, %v181
    %v190 = vsub.f32 0.0, %v182
    %v191 = vsub.f32 0.0, %v183
    %v192 = vsub.f32 0.0, %v184
    %v193 = vmul.f32 %v185, 1.442695
    %v194 = vpow.pop %v193
    %v195 = vmul.f32 %v186, 1.442695
    %v196 = vpow.pop %v195
    %v197 = vmul.f32 %v187, 1.442695
    %v198 = vpow.pop %v197
    %v199 = vmul.f32 %v188, 1.442695
    %v200 = vpow.pop %v199
    %v201 = vmul.f32 %v189, 1.442695
    %v202 = vpow.pop %v201
    %v203 = vmul.f32 %v190, 1.442695
    %v204 = vpow.pop %v203
    %v205 = vmul.f32 %v191, 1.442695
    %v206 = vpow.pop %v205
    %v207 = vmul.f32 %v192, 1.442695
    %v208 = vpow.pop %v207
    %v209 = vadd.f32 %v194, 1.0
    %v210 = vlog2.pop %v209
    %v211 = vmul.f32 %v210, 0.6931472
    %v212 = vmul.f32 -0.5, %v194
    %v213 = vadd.f32 %v212, 1.0
    %v214 = vmul.f32 %v213, %v194
    %v215 = vand.u32 2147483647, %v194
    %vm216 = vcmp.lt.f32.partialorder %v215, 0.0004427343
    %v217 = vsel %vm216, %v214, %v211
    %v218 = vadd.f32 %v196, 1.0
    %v219 = vlog2.pop %v218
    %v220 = vmul.f32 %v219, 0.6931472
    %v221 = vmul.f32 -0.5, %v196
    %v222 = vadd.f32 %v221, 1.0
    %v223 = vmul.f32 %v222, %v196
    %v224 = vand.u32 2147483647, %v196
    %vm225 = vcmp.lt.f32.partialorder %v224, 0.0004427343
    %v226 = vsel %vm225, %v223, %v220
    %v227 = vadd.f32 %v198, 1.0
    %v228 = vlog2.pop %v227
    %v229 = vmul.f32 %v228, 0.6931472
    %v230 = vmul.f32 -0.5, %v198
    %v231 = vadd.f32 %v230, 1.0
    %v232 = vmul.f32 %v231, %v198
    %v233 = vand.u32 2147483647, %v198
    %vm234 = vcmp.lt.f32.partialorder %v233, 0.0004427343
    %v235 = vsel %vm234, %v232, %v229
    %v236 = vadd.f32 %v200, 1.0
    %v237 = vlog2.pop %v236
    %v238 = vmul.f32 %v237, 0.6931472
    %v239 = vmul.f32 -0.5, %v200
    %v240 = vadd.f32 %v239, 1.0
    %v241 = vmul.f32 %v240, %v200
    %v242 = vand.u32 2147483647, %v200
    %vm243 = vcmp.lt.f32.partialorder %v242, 0.0004427343
    %v244 = vsel %vm243, %v241, %v238
    %v245 = vadd.f32 %v202, 1.0
    %v246 = vlog2.pop %v245
    %v247 = vmul.f32 %v246, 0.6931472
    %v248 = vmul.f32 -0.5, %v202
    %v249 = vadd.f32 %v248, 1.0
    %v250 = vmul.f32 %v249, %v202
    %v251 = vand.u32 2147483647, %v202
    %vm252 = vcmp.lt.f32.partialorder %v251, 0.0004427343
    %v253 = vsel %vm252, %v250, %v247
    %v254 = vadd.f32 %v204, 1.0
    %v255 = vlog2.pop %v254
    %v256 = vmul.f32 %v255, 0.6931472
    %v257 = vmul.f32 -0.5, %v204
    %v258 = vadd.f32 %v257, 1.0
    %v259 = vmul.f32 %v258, %v204
    %v260 = vand.u32 2147483647, %v204
    %vm261 = vcmp.lt.f32.partialorder %v260, 0.0004427343
    %v262 = vsel %vm261, %v259, %v256
    %v263 = vadd.f32 %v206, 1.0
    %v264 = vlog2.pop %v263
    %v265 = vmul.f32 %v264, 0.6931472
    %v266 = vmul.f32 -0.5, %v206
    %v267 = vadd.f32 %v266, 1.0
    %v268 = vmul.f32 %v267, %v206
    %v269 = vand.u32 2147483647, %v206
    %vm270 = vcmp.lt.f32.partialorder %v269, 0.0004427343
    %v271 = vsel %vm270, %v268, %v265
    %v272 = vadd.f32 %v208, 1.0
    %v273 = vlog2.pop %v272
    %v274 = vmul.f32 %v273, 0.6931472
    %v275 = vmul.f32 -0.5, %v208
    %v276 = vadd.f32 %v275, 1.0
    %v277 = vmul.f32 %v276, %v208
    %v278 = vand.u32 2147483647, %v208
    %vm279 = vcmp.lt.f32.partialorder %v278, 0.0004427343
    %v280 = vsel %vm279, %v277, %v274
    %v281 = vadd.f32 %v169, %v217
    %v282 = vadd.f32 %v170, %v226
    %v283 = vadd.f32 %v171, %v235
    %v284 = vadd.f32 %v172, %v244
    %v285 = vadd.f32 %v173, %v253
    %v286 = vadd.f32 %v174, %v262
    %v287 = vadd.f32 %v175, %v271
    %v288 = vadd.f32 %v176, %v280
    %v289 = vld [vmem:[%s2] sm:$0xff]
    %v290 = vld [vmem:[%s2 + $0x8] sm:$0xff]
    %v291 = vld [vmem:[%s2 + $0x10] sm:$0xff]
    %v292 = vld [vmem:[%s2 + $0x18] sm:$0xff]
    %v293 = vld [vmem:[%s2 + $0x20] sm:$0xff]
    %v294 = vld [vmem:[%s2 + $0x28] sm:$0xff]
    %v295 = vld [vmem:[%s2 + $0x30] sm:$0xff]
    %v296 = vld [vmem:[%s2 + $0x38] sm:$0xff]
    %v297 = vlaneseq
    %v298 = vshrl.u32 %v297, 7
    %v299 = vsub.s32 0, %v298
    %v300 = vrot.slane %v30, %v299
    %vm301 = vcmask 523264
    %v303 = vsel %vm301, %v281, 0
    %v306 = vsel %vm301, %v282, 0
    %v309 = vsel %vm301, %v283, 0
    %v312 = vsel %vm301, %v284, 0
    %v315 = vsel %vm301, %v285, 0
    %v318 = vsel %vm301, %v286, 0
    %v321 = vsel %vm301, %v287, 0
    %v324 = vsel %vm301, %v288, 0
    %326 = vmatprep.subr.mxu0 0.0
    %327 = vmatpush1.msra.mxu0 %v289
    %328 = vmatprep.subr.mxu0 0.0
    %329 = vmatpush1.msra.mxu0 %v290
    %330 = vmatprep.subr.mxu0 0.0
    %331 = vmatpush1.msra.mxu0 %v291
    %332 = vmatprep.subr.mxu0 0.0
    %333 = vmatpush1.msra.mxu0 %v292
    %334 = vmatprep.subr.mxu0 0.0
    %335 = vmatpush1.msra.mxu0 %v293
    %336 = vmatprep.subr.mxu0 0.0
    %337 = vmatpush1.msra.mxu0 %v294
    %338 = vmatprep.subr.mxu0 0.0
    %339 = vmatpush1.msra.mxu0 %v295
    %340 = vmatprep.subr.mxu0 0.0
    %341 = vmatpush1.msra.mxu0 %v296
    %342 = vmatprep.subr.mxu0 0.0
    %343 = vmatpush1.msra.mxu0 0.0
    %344 = vmatprep.subr.mxu0 0.0
    %345 = vmatpush1.msra.mxu0 0.0
    %346 = vmatprep.subr.mxu0 0.0
    %347 = vmatpush1.msra.mxu0 0.0
    %348 = vmatprep.subr.mxu0 0.0
    %349 = vmatpush1.msra.mxu0 0.0
    %350 = vmatprep.subr.mxu0 0.0
    %351 = vmatpush1.msra.mxu0 0.0
    %352 = vmatprep.subr.mxu0 0.0
    %353 = vmatpush1.msra.mxu0 0.0
    %354 = vmatprep.subr.mxu0 0.0
    %355 = vmatpush1.msra.mxu0 0.0
    %356 = vmatprep.subr.mxu0 0.0
    %357 = vmatpush1.msra.mxu0 0.0
    %358 = vmatprep.subr.mxu0 0.0
    %359 = vmatpush1.msra.mxu0 0.0
    %360 = vmatprep.subr.mxu0 0.0
    %361 = vmatpush1.msra.mxu0 0.0
    %362 = vmatprep.subr.mxu0 0.0
    %363 = vmatpush1.msra.mxu0 0.0
    %364 = vmatprep.subr.mxu0 0.0
    %365 = vmatpush1.msra.mxu0 0.0
    %366 = vmatprep.subr.mxu0 0.0
    %367 = vmatpush1.msra.mxu0 0.0
    %368 = vmatprep.subr.mxu0 0.0
    %369 = vmatpush1.msra.mxu0 0.0
    %370 = vmatprep.subr.mxu0 0.0
    %371 = vmatpush1.msra.mxu0 0.0
    %372 = vmatprep.subr.mxu0 0.0
    %373 = vmatpush1.msra.mxu0 0.0
    %374 = vmatprep.subr.mxu0 0.0
    %375 = vmatpush1.msra.mxu0 0.0
    %376 = vmatprep.subr.mxu0 0.0
    %377 = vmatpush1.msra.mxu0 0.0
    %378 = vmatprep.subr.mxu0 0.0
    %379 = vmatpush1.msra.mxu0 0.0
    %380 = vmatprep.subr.mxu0 0.0
    %381 = vmatpush1.msra.mxu0 0.0
    %382 = vmatprep.subr.mxu0 0.0
    %383 = vmatpush1.msra.mxu0 0.0
    %384 = vmatprep.subr.mxu0 0.0
    %385 = vmatpush1.msra.mxu0 0.0
    %386 = vmatprep.subr.mxu0 0.0
    %387 = vmatpush1.msra.mxu0 0.0
    %388 = vmatprep.subr.mxu0 0.0
    %389 = vmatpush1.msra.mxu0 0.0
    %390 = vmatprep.mubr.f32.mxu0 0.0
    %391 = vmatmul.mubr.f32.gmra.mrb[0].mxu0 %v303
    %v392 = vpop.f32.mrb[0].mxu0
    %v393 = vadd.f32 %v300, %v392
    %v394 = vpop.f32.mrb[0].mxu0
    %395 = vmatprep.mubr.f32.mxu0 0.0
    %396 = vmatmul.mubr.f32.gmra.mrb[0].mxu0 %v306
    %v397 = vpop.f32.mrb[0].mxu0
    %v398 = vadd.f32 %v300, %v397
    %v399 = vpop.f32.mrb[0].mxu0
    %400 = vmatprep.mubr.f32.mxu0 0.0
    %401 = vmatmul.mubr.f32.gmra.mrb[0].mxu0 %v309
    %v402 = vpop.f32.mrb[0].mxu0
    %v403 = vadd.f32 %v300, %v402
    %v404 = vpop.f32.mrb[0].mxu0
    %405 = vmatprep.mubr.f32.mxu0 0.0
    %406 = vmatmul.mubr.f32.gmra.mrb[0].mxu0 %v312
    %v407 = vpop.f32.mrb[0].mxu0
    %v408 = vadd.f32 %v300, %v407
    %v409 = vpop.f32.mrb[0].mxu0
    %410 = vmatprep.mubr.f32.mxu0 0.0
    %411 = vmatmul.mubr.f32.gmra.mrb[0].mxu0 %v315
    %v412 = vpop.f32.mrb[0].mxu0
    %v413 = vadd.f32 %v300, %v412
    %v414 = vpop.f32.mrb[0].mxu0
    %415 = vmatprep.mubr.f32.mxu0 0.0
    %416 = vmatmul.mubr.f32.gmra.mrb[0].mxu0 %v318
    %v417 = vpop.f32.mrb[0].mxu0
    %v418 = vadd.f32 %v300, %v417
    %v419 = vpop.f32.mrb[0].mxu0
    %420 = vmatprep.mubr.f32.mxu0 0.0
    %421 = vmatmul.mubr.f32.gmra.mrb[0].mxu0 %v321
    %v422 = vpop.f32.mrb[0].mxu0
    %v423 = vadd.f32 %v300, %v422
    %v424 = vpop.f32.mrb[0].mxu0
    %425 = vmatprep.mubr.f32.mxu0 0.0
    %426 = vmatmul.mubr.f32.gmra.mrb[0].mxu0 %v324
    %v427 = vpop.f32.mrb[0].mxu0
    %v428 = vadd.f32 %v300, %v427
    %v429 = vpop.f32.mrb[0].mxu0
    %430 = vdwg.mxu0
    %v431 = vmax.f32 %v393, 0.0
    %v432 = vmax.f32 %v398, 0.0
    %v433 = vmax.f32 %v403, 0.0
    %v434 = vmax.f32 %v408, 0.0
    %v435 = vmax.f32 %v413, 0.0
    %v436 = vmax.f32 %v418, 0.0
    %v437 = vmax.f32 %v423, 0.0
    %v438 = vmax.f32 %v428, 0.0
    %v439 = vand.u32 2147483647, %v393
    %v440 = vand.u32 2147483647, %v398
    %v441 = vand.u32 2147483647, %v403
    %v442 = vand.u32 2147483647, %v408
    %v443 = vand.u32 2147483647, %v413
    %v444 = vand.u32 2147483647, %v418
    %v445 = vand.u32 2147483647, %v423
    %v446 = vand.u32 2147483647, %v428
    %v447 = vsub.f32 0.0, %v439
    %v448 = vsub.f32 0.0, %v440
    %v449 = vsub.f32 0.0, %v441
    %v450 = vsub.f32 0.0, %v442
    %v451 = vsub.f32 0.0, %v443
    %v452 = vsub.f32 0.0, %v444
    %v453 = vsub.f32 0.0, %v445
    %v454 = vsub.f32 0.0, %v446
    %v455 = vmul.f32 %v447, 1.442695
    %v456 = vpow.pop %v455
    %v457 = vmul.f32 %v448, 1.442695
    %v458 = vpow.pop %v457
    %v459 = vmul.f32 %v449, 1.442695
    %v460 = vpow.pop %v459
    %v461 = vmul.f32 %v450, 1.442695
    %v462 = vpow.pop %v461
    %v463 = vmul.f32 %v451, 1.442695
    %v464 = vpow.pop %v463
    %v465 = vmul.f32 %v452, 1.442695
    %v466 = vpow.pop %v465
    %v467 = vmul.f32 %v453, 1.442695
    %v468 = vpow.pop %v467
    %v469 = vmul.f32 %v454, 1.442695
    %v470 = vpow.pop %v469
    %v471 = vadd.f32 %v456, 1.0
    %v472 = vlog2.pop %v471
    %v473 = vmul.f32 %v472, 0.6931472
    %v474 = vmul.f32 -0.5, %v456
    %v475 = vadd.f32 %v474, 1.0
    %v476 = vmul.f32 %v475, %v456
    %v477 = vand.u32 2147483647, %v456
    %vm478 = vcmp.lt.f32.partialorder %v477, 0.0004427343
    %v479 = vsel %vm478, %v476, %v473
    %v480 = vadd.f32 %v458, 1.0
    %v481 = vlog2.pop %v480
    %v482 = vmul.f32 %v481, 0.6931472
    %v483 = vmul.f32 -0.5, %v458
    %v484 = vadd.f32 %v483, 1.0
    %v485 = vmul.f32 %v484, %v458
    %v486 = vand.u32 2147483647, %v458
    %vm487 = vcmp.lt.f32.partialorder %v486, 0.0004427343
    %v488 = vsel %vm487, %v485, %v482
    %v489 = vadd.f32 %v460, 1.0
    %v490 = vlog2.pop %v489
    %v491 = vmul.f32 %v490, 0.6931472
    %v492 = vmul.f32 -0.5, %v460
    %v493 = vadd.f32 %v492, 1.0
    %v494 = vmul.f32 %v493, %v460
    %v495 = vand.u32 2147483647, %v460
    %vm496 = vcmp.lt.f32.partialorder %v495, 0.0004427343
    %v497 = vsel %vm496, %v494, %v491
    %v498 = vadd.f32 %v462, 1.0
    %v499 = vlog2.pop %v498
    %v500 = vmul.f32 %v499, 0.6931472
    %v501 = vmul.f32 -0.5, %v462
    %v502 = vadd.f32 %v501, 1.0
    %v503 = vmul.f32 %v502, %v462
    %v504 = vand.u32 2147483647, %v462
    %vm505 = vcmp.lt.f32.partialorder %v504, 0.0004427343
    %v506 = vsel %vm505, %v503, %v500
    %v507 = vadd.f32 %v464, 1.0
    %v508 = vlog2.pop %v507
    %v509 = vmul.f32 %v508, 0.6931472
    %v510 = vmul.f32 -0.5, %v464
    %v511 = vadd.f32 %v510, 1.0
    %v512 = vmul.f32 %v511, %v464
    %v513 = vand.u32 2147483647, %v464
    %vm514 = vcmp.lt.f32.partialorder %v513, 0.0004427343
    %v515 = vsel %vm514, %v512, %v509
    %v516 = vadd.f32 %v466, 1.0
    %v517 = vlog2.pop %v516
    %v518 = vmul.f32 %v517, 0.6931472
    %v519 = vmul.f32 -0.5, %v466
    %v520 = vadd.f32 %v519, 1.0
    %v521 = vmul.f32 %v520, %v466
    %v522 = vand.u32 2147483647, %v466
    %vm523 = vcmp.lt.f32.partialorder %v522, 0.0004427343
    %v524 = vsel %vm523, %v521, %v518
    %v525 = vadd.f32 %v468, 1.0
    %v526 = vlog2.pop %v525
    %v527 = vmul.f32 %v526, 0.6931472
    %v528 = vmul.f32 -0.5, %v468
    %v529 = vadd.f32 %v528, 1.0
    %v530 = vmul.f32 %v529, %v468
    %v531 = vand.u32 2147483647, %v468
    %vm532 = vcmp.lt.f32.partialorder %v531, 0.0004427343
    %v533 = vsel %vm532, %v530, %v527
    %v534 = vadd.f32 %v470, 1.0
    %v535 = vlog2.pop %v534
    %v536 = vmul.f32 %v535, 0.6931472
    %v537 = vmul.f32 -0.5, %v470
    %v538 = vadd.f32 %v537, 1.0
    %v539 = vmul.f32 %v538, %v470
    %v540 = vand.u32 2147483647, %v470
    %vm541 = vcmp.lt.f32.partialorder %v540, 0.0004427343
    %v542 = vsel %vm541, %v539, %v536
    %v543 = vadd.f32 %v431, %v479
    %v544 = vadd.f32 %v432, %v488
    %v545 = vadd.f32 %v433, %v497
    %v546 = vadd.f32 %v434, %v506
    %v547 = vadd.f32 %v435, %v515
    %v548 = vadd.f32 %v436, %v524
    %v549 = vadd.f32 %v437, %v533
    %v550 = vadd.f32 %v438, %v542
    %v551 = vld [vmem:[%s3] sm:$0xff]
    %v552 = vld [vmem:[%s3 + $0x8] sm:$0xff]
    %v553 = vld [vmem:[%s3 + $0x10] sm:$0xff]
    %v554 = vld [vmem:[%s3 + $0x18] sm:$0xff]
    %v555 = vlaneseq
    %v556 = vshrl.u32 %v555, 7
    %v557 = vsub.s32 0, %v556
    %v558 = vrot.slane %v31, %v557
    %vm559 = vcmask 261120
    %v561 = vsel %vm559, %v543, 0
    %v564 = vsel %vm559, %v544, 0
    %v567 = vsel %vm559, %v545, 0
    %v570 = vsel %vm559, %v546, 0
    %v573 = vsel %vm559, %v547, 0
    %v576 = vsel %vm559, %v548, 0
    %v579 = vsel %vm559, %v549, 0
    %v582 = vsel %vm559, %v550, 0
    %584 = vmatprep.subr.mxu0 0.0
    %585 = vmatpush1.msra.mxu0 %v551
    %586 = vmatprep.subr.mxu0 0.0
    %587 = vmatpush1.msra.mxu0 %v552
    %588 = vmatprep.subr.mxu0 0.0
    %589 = vmatpush1.msra.mxu0 %v553
    %590 = vmatprep.subr.mxu0 0.0
    %591 = vmatpush1.msra.mxu0 %v554
    %592 = vmatprep.subr.mxu0 0.0
    %593 = vmatpush1.msra.mxu0 0.0
    %594 = vmatprep.subr.mxu0 0.0
    %595 = vmatpush1.msra.mxu0 0.0
    %596 = vmatprep.subr.mxu0 0.0
    %597 = vmatpush1.msra.mxu0 0.0
    %598 = vmatprep.subr.mxu0 0.0
    %599 = vmatpush1.msra.mxu0 0.0
    %600 = vmatprep.subr.mxu0 0.0
    %601 = vmatpush1.msra.mxu0 0.0
    %602 = vmatprep.subr.mxu0 0.0
    %603 = vmatpush1.msra.mxu0 0.0
    %604 = vmatprep.subr.mxu0 0.0
    %605 = vmatpush1.msra.mxu0 0.0
    %606 = vmatprep.subr.mxu0 0.0
    %607 = vmatpush1.msra.mxu0 0.0
    %608 = vmatprep.subr.mxu0 0.0
    %609 = vmatpush1.msra.mxu0 0.0
    %610 = vmatprep.subr.mxu0 0.0
    %611 = vmatpush1.msra.mxu0 0.0
    %612 = vmatprep.subr.mxu0 0.0
    %613 = vmatpush1.msra.mxu0 0.0
    %614 = vmatprep.subr.mxu0 0.0
    %615 = vmatpush1.msra.mxu0 0.0
    %616 = vmatprep.subr.mxu0 0.0
    %617 = vmatpush1.msra.mxu0 0.0
    %618 = vmatprep.subr.mxu0 0.0
    %619 = vmatpush1.msra.mxu0 0.0
    %620 = vmatprep.subr.mxu0 0.0
    %621 = vmatpush1.msra.mxu0 0.0
    %622 = vmatprep.subr.mxu0 0.0
    %623 = vmatpush1.msra.mxu0 0.0
    %624 = vmatprep.subr.mxu0 0.0
    %625 = vmatpush1.msra.mxu0 0.0
    %626 = vmatprep.subr.mxu0 0.0
    %627 = vmatpush1.msra.mxu0 0.0
    %628 = vmatprep.subr.mxu0 0.0
    %629 = vmatpush1.msra.mxu0 0.0
    %630 = vmatprep.subr.mxu0 0.0
    %631 = vmatpush1.msra.mxu0 0.0
    %632 = vmatprep.subr.mxu0 0.0
    %633 = vmatpush1.msra.mxu0 0.0
    %634 = vmatprep.subr.mxu0 0.0
    %635 = vmatpush1.msra.mxu0 0.0
    %636 = vmatprep.subr.mxu0 0.0
    %637 = vmatpush1.msra.mxu0 0.0
    %638 = vmatprep.subr.mxu0 0.0
    %639 = vmatpush1.msra.mxu0 0.0
    %640 = vmatprep.subr.mxu0 0.0
    %641 = vmatpush1.msra.mxu0 0.0
    %642 = vmatprep.subr.mxu0 0.0
    %643 = vmatpush1.msra.mxu0 0.0
    %644 = vmatprep.subr.mxu0 0.0
    %645 = vmatpush1.msra.mxu0 0.0
    %646 = vmatprep.subr.mxu0 0.0
    %647 = vmatpush1.msra.mxu0 0.0
    %648 = vmatprep.mubr.f32.mxu0 0.0
    %649 = vmatmul.mubr.f32.gmra.mrb[0].mxu0 %v561
    %v650 = vpop.f32.mrb[0].mxu0
    %v651 = vadd.f32 %v558, %v650
    %v652 = vpop.f32.mrb[0].mxu0
    %653 = vmatprep.mubr.f32.mxu0 0.0
    %654 = vmatmul.mubr.f32.gmra.mrb[0].mxu0 %v564
    %v655 = vpop.f32.mrb[0].mxu0
    %v656 = vadd.f32 %v558, %v655
    %v657 = vpop.f32.mrb[0].mxu0
    %658 = vmatprep.mubr.f32.mxu0 0.0
    %659 = vmatmul.mubr.f32.gmra.mrb[0].mxu0 %v567
    %v660 = vpop.f32.mrb[0].mxu0
    %v661 = vadd.f32 %v558, %v660
    %v662 = vpop.f32.mrb[0].mxu0
    %663 = vmatprep.mubr.f32.mxu0 0.0
    %664 = vmatmul.mubr.f32.gmra.mrb[0].mxu0 %v570
    %v665 = vpop.f32.mrb[0].mxu0
    %v666 = vadd.f32 %v558, %v665
    %v667 = vpop.f32.mrb[0].mxu0
    %668 = vmatprep.mubr.f32.mxu0 0.0
    %669 = vmatmul.mubr.f32.gmra.mrb[0].mxu0 %v573
    %v670 = vpop.f32.mrb[0].mxu0
    %v671 = vadd.f32 %v558, %v670
    %v672 = vpop.f32.mrb[0].mxu0
    %673 = vmatprep.mubr.f32.mxu0 0.0
    %674 = vmatmul.mubr.f32.gmra.mrb[0].mxu0 %v576
    %v675 = vpop.f32.mrb[0].mxu0
    %v676 = vadd.f32 %v558, %v675
    %v677 = vpop.f32.mrb[0].mxu0
    %678 = vmatprep.mubr.f32.mxu0 0.0
    %679 = vmatmul.mubr.f32.gmra.mrb[0].mxu0 %v579
    %v680 = vpop.f32.mrb[0].mxu0
    %v681 = vadd.f32 %v558, %v680
    %v682 = vpop.f32.mrb[0].mxu0
    %683 = vmatprep.mubr.f32.mxu0 0.0
    %684 = vmatmul.mubr.f32.gmra.mrb[0].mxu0 %v582
    %v685 = vpop.f32.mrb[0].mxu0
    %v686 = vadd.f32 %v558, %v685
    %v687 = vpop.f32.mrb[0].mxu0
    %688 = vdwg.mxu0
    %v689 = vsel %vm559, %v651, 0.0
    %v690 = vsel %vm559, %v656, 0.0
    %v691 = vadd.f32 %v689, %v690
    %v692 = vsel %vm559, %v661, 0.0
    %v693 = vadd.f32 %v691, %v692
    %v694 = vsel %vm559, %v666, 0.0
    %v695 = vadd.f32 %v693, %v694
    %v696 = vsel %vm559, %v671, 0.0
    %v697 = vadd.f32 %v695, %v696
    %v698 = vsel %vm559, %v676, 0.0
    %v699 = vadd.f32 %v697, %v698
    %v700 = vsel %vm559, %v681, 0.0
    %v701 = vadd.f32 %v699, %v700
    %v702 = vsel %vm559, %v686, 0.0
    %v703 = vadd.f32 %v701, %v702
    %v704 = vrot.slane %v703, 4
    %v705 = vadd.f32 %v703, %v704
    %v706 = vrot.slane %v705, 2
    %v707 = vadd.f32 %v705, %v706
    %v708 = vrot.slane %v707, 1
    %v709 = vadd.f32 %v707, %v708
    %v710 = vrcp.pop 64.0
    %v711 = vmul.f32 %v709, %v710
    %v712 = vsub.f32 %v651, %v711
    %v713 = vsub.f32 %v656, %v711
    %v714 = vsub.f32 %v661, %v711
    %v715 = vsub.f32 %v666, %v711
    %v716 = vsub.f32 %v671, %v711
    %v717 = vsub.f32 %v676, %v711
    %v718 = vsub.f32 %v681, %v711
    %v719 = vsub.f32 %v686, %v711
    %v720 = vmul.f32 %v712, %v712
    %v721 = vmul.f32 %v713, %v713
    %v722 = vmul.f32 %v714, %v714
    %v723 = vmul.f32 %v715, %v715
    %v724 = vmul.f32 %v716, %v716
    %v725 = vmul.f32 %v717, %v717
    %v726 = vmul.f32 %v718, %v718
    %v727 = vmul.f32 %v719, %v719
    %v728 = vsel %vm559, %v720, 0.0
    %v729 = vsel %vm559, %v721, 0.0
    %v730 = vadd.f32 %v728, %v729
    %v731 = vsel %vm559, %v722, 0.0
    %v732 = vadd.f32 %v730, %v731
    %v733 = vsel %vm559, %v723, 0.0
    %v734 = vadd.f32 %v732, %v733
    %v735 = vsel %vm559, %v724, 0.0
    %v736 = vadd.f32 %v734, %v735
    %v737 = vsel %vm559, %v725, 0.0
    %v738 = vadd.f32 %v736, %v737
    %v739 = vsel %vm559, %v726, 0.0
    %v740 = vadd.f32 %v738, %v739
    %v741 = vsel %vm559, %v727, 0.0
    %v742 = vadd.f32 %v740, %v741
    %v743 = vrot.slane %v742, 4
    %v744 = vadd.f32 %v742, %v743
    %v745 = vrot.slane %v744, 2
    %v746 = vadd.f32 %v744, %v745
    %v747 = vrot.slane %v746, 1
    %v748 = vadd.f32 %v746, %v747
    %v749 = vmul.f32 %v748, %v710
    %v750 = vlaneseq
    %v751 = vshrl.u32 %v750, 7
    %v752 = vsub.s32 0, %v751
    %v753 = vrot.slane %v32, %v752
    %v754 = vmul.f32 %v753, %v712
    %v755 = vmul.f32 %v753, %v713
    %v756 = vmul.f32 %v753, %v714
    %v757 = vmul.f32 %v753, %v715
    %v758 = vmul.f32 %v753, %v716
    %v759 = vmul.f32 %v753, %v717
    %v760 = vmul.f32 %v753, %v718
    %v761 = vmul.f32 %v753, %v719
    %v762 = vadd.f32 %v749, 0.001
    %v763 = vrsqrt.pop %v762
    %v764 = vmul.f32 %v754, %v763
    %v765 = vmul.f32 %v755, %v763
    %v766 = vmul.f32 %v756, %v763
    %v767 = vmul.f32 %v757, %v763
    %v768 = vmul.f32 %v758, %v763
    %v769 = vmul.f32 %v759, %v763
    %v770 = vmul.f32 %v760, %v763
    %v771 = vmul.f32 %v761, %v763
    %v772 = vlaneseq
    %v773 = vshrl.u32 %v772, 7
    %v774 = vsub.s32 0, %v773
    %v775 = vrot.slane %v33, %v774
    %v776 = vadd.f32 %v764, %v775
    %v777 = vadd.f32 %v765, %v775
    %v778 = vadd.f32 %v766, %v775
    %v779 = vadd.f32 %v767, %v775
    %v780 = vadd.f32 %v768, %v775
    %v781 = vadd.f32 %v769, %v775
    %v782 = vadd.f32 %v770, %v775
    %v783 = vadd.f32 %v771, %v775
    %v784 = vmul.f32 %v776, 0.5
    %v785 = vmul.f32 %v777, 0.5
    %v786 = vmul.f32 %v778, 0.5
    %v787 = vmul.f32 %v779, 0.5
    %v788 = vmul.f32 %v780, 0.5
    %v789 = vmul.f32 %v781, 0.5
    %v790 = vmul.f32 %v782, 0.5
    %v791 = vmul.f32 %v783, 0.5
    %v792 = vmul.f32 %v784, 1.442695
    %v793 = vpow.pop %v792
    %v794 = vmul.f32 %v785, 1.442695
    %v795 = vpow.pop %v794
    %v796 = vmul.f32 %v786, 1.442695
    %v797 = vpow.pop %v796
    %v798 = vmul.f32 %v787, 1.442695
    %v799 = vpow.pop %v798
    %v800 = vmul.f32 %v788, 1.442695
    %v801 = vpow.pop %v800
    %v802 = vmul.f32 %v789, 1.442695
    %v803 = vpow.pop %v802
    %v804 = vmul.f32 %v790, 1.442695
    %v805 = vpow.pop %v804
    %v806 = vmul.f32 %v791, 1.442695
    %v807 = vpow.pop %v806
    %v808 = vld [vmem:[%s6] sm:$0xff]
    %v809 = vld [vmem:[%s6 + $0x8] sm:$0xff]
    %v810 = vld [vmem:[%s6 + $0x10] sm:$0xff]
    %v811 = vld [vmem:[%s6 + $0x18] sm:$0xff]
    %v812 = vld [vmem:[%s6 + $0x20] sm:$0xff]
    %v813 = vld [vmem:[%s6 + $0x28] sm:$0xff]
    %v814 = vld [vmem:[%s6 + $0x30] sm:$0xff]
    %v815 = vld [vmem:[%s6 + $0x38] sm:$0xff]
    %824 = vrot.lane.b32.xlu0 %v793, 112
    %v825 = vpop.permute.xlu0 %824
    %826 = vrot.lane.b32.xlu0 %v795, 112
    %v827 = vpop.permute.xlu0 %826
    %828 = vrot.lane.b32.xlu0 %v797, 112
    %v829 = vpop.permute.xlu0 %828
    %830 = vrot.lane.b32.xlu0 %v799, 112
    %v831 = vpop.permute.xlu0 %830
    %832 = vrot.lane.b32.xlu0 %v801, 112
    %v833 = vpop.permute.xlu0 %832
    %834 = vrot.lane.b32.xlu0 %v803, 112
    %v835 = vpop.permute.xlu0 %834
    %836 = vrot.lane.b32.xlu0 %v805, 112
    %v837 = vpop.permute.xlu0 %836
    %838 = vrot.lane.b32.xlu0 %v807, 112
    %v839 = vpop.permute.xlu0 %838
    %v848 = vmul.f32 %v808, %v825
    %v849 = vmul.f32 %v809, %v827
    %v850 = vmul.f32 %v810, %v829
    %v851 = vmul.f32 %v811, %v831
    %v852 = vmul.f32 %v812, %v833
    %v853 = vmul.f32 %v813, %v835
    %v854 = vmul.f32 %v814, %v837
    %v855 = vmul.f32 %v815, %v839
    %v856 = vadd.f32 %v776, %v848
    %v857 = vadd.f32 %v777, %v849
    %v858 = vadd.f32 %v778, %v850
    %v859 = vadd.f32 %v779, %v851
    %v860 = vadd.f32 %v780, %v852
    %v861 = vadd.f32 %v781, %v853
    %v862 = vadd.f32 %v782, %v854
    %v863 = vadd.f32 %v783, %v855
    %v864 = vmax.f32 %v856, 0.0
    %v865 = vmax.f32 %v857, 0.0
    %v866 = vmax.f32 %v858, 0.0
    %v867 = vmax.f32 %v859, 0.0
    %v868 = vmax.f32 %v860, 0.0
    %v869 = vmax.f32 %v861, 0.0
    %v870 = vmax.f32 %v862, 0.0
    %v871 = vmax.f32 %v863, 0.0
    %v872 = vand.u32 2147483647, %v856
    %v873 = vand.u32 2147483647, %v857
    %v874 = vand.u32 2147483647, %v858
    %v875 = vand.u32 2147483647, %v859
    %v876 = vand.u32 2147483647, %v860
    %v877 = vand.u32 2147483647, %v861
    %v878 = vand.u32 2147483647, %v862
    %v879 = vand.u32 2147483647, %v863
    %v880 = vsub.f32 0.0, %v872
    %v881 = vsub.f32 0.0, %v873
    %v882 = vsub.f32 0.0, %v874
    %v883 = vsub.f32 0.0, %v875
    %v884 = vsub.f32 0.0, %v876
    %v885 = vsub.f32 0.0, %v877
    %v886 = vsub.f32 0.0, %v878
    %v887 = vsub.f32 0.0, %v879
    %v888 = vmul.f32 %v880, 1.442695
    %v889 = vpow.pop %v888
    %v890 = vmul.f32 %v881, 1.442695
    %v891 = vpow.pop %v890
    %v892 = vmul.f32 %v882, 1.442695
    %v893 = vpow.pop %v892
    %v894 = vmul.f32 %v883, 1.442695
    %v895 = vpow.pop %v894
    %v896 = vmul.f32 %v884, 1.442695
    %v897 = vpow.pop %v896
    %v898 = vmul.f32 %v885, 1.442695
    %v899 = vpow.pop %v898
    %v900 = vmul.f32 %v886, 1.442695
    %v901 = vpow.pop %v900
    %v902 = vmul.f32 %v887, 1.442695
    %v903 = vpow.pop %v902
    %v904 = vadd.f32 %v889, 1.0
    %v905 = vlog2.pop %v904
    %v906 = vmul.f32 %v905, 0.6931472
    %v907 = vmul.f32 -0.5, %v889
    %v908 = vadd.f32 %v907, 1.0
    %v909 = vmul.f32 %v908, %v889
    %v910 = vand.u32 2147483647, %v889
    %vm911 = vcmp.lt.f32.partialorder %v910, 0.0004427343
    %v912 = vsel %vm911, %v909, %v906
    %v913 = vadd.f32 %v891, 1.0
    %v914 = vlog2.pop %v913
    %v915 = vmul.f32 %v914, 0.6931472
    %v916 = vmul.f32 -0.5, %v891
    %v917 = vadd.f32 %v916, 1.0
    %v918 = vmul.f32 %v917, %v891
    %v919 = vand.u32 2147483647, %v891
    %vm920 = vcmp.lt.f32.partialorder %v919, 0.0004427343
    %v921 = vsel %vm920, %v918, %v915
    %v922 = vadd.f32 %v893, 1.0
    %v923 = vlog2.pop %v922
    %v924 = vmul.f32 %v923, 0.6931472
    %v925 = vmul.f32 -0.5, %v893
    %v926 = vadd.f32 %v925, 1.0
    %v927 = vmul.f32 %v926, %v893
    %v928 = vand.u32 2147483647, %v893
    %vm929 = vcmp.lt.f32.partialorder %v928, 0.0004427343
    %v930 = vsel %vm929, %v927, %v924
    %v931 = vadd.f32 %v895, 1.0
    %v932 = vlog2.pop %v931
    %v933 = vmul.f32 %v932, 0.6931472
    %v934 = vmul.f32 -0.5, %v895
    %v935 = vadd.f32 %v934, 1.0
    %v936 = vmul.f32 %v935, %v895
    %v937 = vand.u32 2147483647, %v895
    %vm938 = vcmp.lt.f32.partialorder %v937, 0.0004427343
    %v939 = vsel %vm938, %v936, %v933
    %v940 = vadd.f32 %v897, 1.0
    %v941 = vlog2.pop %v940
    %v942 = vmul.f32 %v941, 0.6931472
    %v943 = vmul.f32 -0.5, %v897
    %v944 = vadd.f32 %v943, 1.0
    %v945 = vmul.f32 %v944, %v897
    %v946 = vand.u32 2147483647, %v897
    %vm947 = vcmp.lt.f32.partialorder %v946, 0.0004427343
    %v948 = vsel %vm947, %v945, %v942
    %v949 = vadd.f32 %v899, 1.0
    %v950 = vlog2.pop %v949
    %v951 = vmul.f32 %v950, 0.6931472
    %v952 = vmul.f32 -0.5, %v899
    %v953 = vadd.f32 %v952, 1.0
    %v954 = vmul.f32 %v953, %v899
    %v955 = vand.u32 2147483647, %v899
    %vm956 = vcmp.lt.f32.partialorder %v955, 0.0004427343
    %v957 = vsel %vm956, %v954, %v951
    %v958 = vadd.f32 %v901, 1.0
    %v959 = vlog2.pop %v958
    %v960 = vmul.f32 %v959, 0.6931472
    %v961 = vmul.f32 -0.5, %v901
    %v962 = vadd.f32 %v961, 1.0
    %v963 = vmul.f32 %v962, %v901
    %v964 = vand.u32 2147483647, %v901
    %vm965 = vcmp.lt.f32.partialorder %v964, 0.0004427343
    %v966 = vsel %vm965, %v963, %v960
    %v967 = vadd.f32 %v903, 1.0
    %v968 = vlog2.pop %v967
    %v969 = vmul.f32 %v968, 0.6931472
    %v970 = vmul.f32 -0.5, %v903
    %v971 = vadd.f32 %v970, 1.0
    %v972 = vmul.f32 %v971, %v903
    %v973 = vand.u32 2147483647, %v903
    %vm974 = vcmp.lt.f32.partialorder %v973, 0.0004427343
    %v975 = vsel %vm974, %v972, %v969
    %v976 = vadd.f32 %v864, %v912
    %v977 = vadd.f32 %v865, %v921
    %v978 = vadd.f32 %v866, %v930
    %v979 = vadd.f32 %v867, %v939
    %v980 = vadd.f32 %v868, %v948
    %v981 = vadd.f32 %v869, %v957
    %v982 = vadd.f32 %v870, %v966
    %v983 = vadd.f32 %v871, %v975
    %v984 = vld [vmem:[%s4] sm:$0xff]
    %v985 = vld [vmem:[%s4 + $0x8] sm:$0xff]
    %vm986 = vcmask 130048
    %v988 = vsel %vm986, %v976, 0
    %v991 = vsel %vm986, %v977, 0
    %v994 = vsel %vm986, %v978, 0
    %v997 = vsel %vm986, %v979, 0
    %v1000 = vsel %vm986, %v980, 0
    %v1003 = vsel %vm986, %v981, 0
    %v1006 = vsel %vm986, %v982, 0
    %v1009 = vsel %vm986, %v983, 0
    %1011 = vmatprep.subr.mxu0 0.0
    %1012 = vmatpush1.msra.mxu0 %v984
    %1013 = vmatprep.subr.mxu0 0.0
    %1014 = vmatpush1.msra.mxu0 %v985
    %1015 = vmatprep.subr.mxu0 0.0
    %1016 = vmatpush1.msra.mxu0 0.0
    %1017 = vmatprep.subr.mxu0 0.0
    %1018 = vmatpush1.msra.mxu0 0.0
    %1019 = vmatprep.subr.mxu0 0.0
    %1020 = vmatpush1.msra.mxu0 0.0
    %1021 = vmatprep.subr.mxu0 0.0
    %1022 = vmatpush1.msra.mxu0 0.0
    %1023 = vmatprep.subr.mxu0 0.0
    %1024 = vmatpush1.msra.mxu0 0.0
    %1025 = vmatprep.subr.mxu0 0.0
    %1026 = vmatpush1.msra.mxu0 0.0
    %1027 = vmatprep.subr.mxu0 0.0
    %1028 = vmatpush1.msra.mxu0 0.0
    %1029 = vmatprep.subr.mxu0 0.0
    %1030 = vmatpush1.msra.mxu0 0.0
    %1031 = vmatprep.subr.mxu0 0.0
    %1032 = vmatpush1.msra.mxu0 0.0
    %1033 = vmatprep.subr.mxu0 0.0
    %1034 = vmatpush1.msra.mxu0 0.0
    %1035 = vmatprep.subr.mxu0 0.0
    %1036 = vmatpush1.msra.mxu0 0.0
    %1037 = vmatprep.subr.mxu0 0.0
    %1038 = vmatpush1.msra.mxu0 0.0
    %1039 = vmatprep.subr.mxu0 0.0
    %1040 = vmatpush1.msra.mxu0 0.0
    %1041 = vmatprep.subr.mxu0 0.0
    %1042 = vmatpush1.msra.mxu0 0.0
    %1043 = vmatprep.subr.mxu0 0.0
    %1044 = vmatpush1.msra.mxu0 0.0
    %1045 = vmatprep.subr.mxu0 0.0
    %1046 = vmatpush1.msra.mxu0 0.0
    %1047 = vmatprep.subr.mxu0 0.0
    %1048 = vmatpush1.msra.mxu0 0.0
    %1049 = vmatprep.subr.mxu0 0.0
    %1050 = vmatpush1.msra.mxu0 0.0
    %1051 = vmatprep.subr.mxu0 0.0
    %1052 = vmatpush1.msra.mxu0 0.0
    %1053 = vmatprep.subr.mxu0 0.0
    %1054 = vmatpush1.msra.mxu0 0.0
    %1055 = vmatprep.subr.mxu0 0.0
    %1056 = vmatpush1.msra.mxu0 0.0
    %1057 = vmatprep.subr.mxu0 0.0
    %1058 = vmatpush1.msra.mxu0 0.0
    %1059 = vmatprep.subr.mxu0 0.0
    %1060 = vmatpush1.msra.mxu0 0.0
    %1061 = vmatprep.subr.mxu0 0.0
    %1062 = vmatpush1.msra.mxu0 0.0
    %1063 = vmatprep.subr.mxu0 0.0
    %1064 = vmatpush1.msra.mxu0 0.0
    %1065 = vmatprep.subr.mxu0 0.0
    %1066 = vmatpush1.msra.mxu0 0.0
    %1067 = vmatprep.subr.mxu0 0.0
    %1068 = vmatpush1.msra.mxu0 0.0
    %1069 = vmatprep.subr.mxu0 0.0
    %1070 = vmatpush1.msra.mxu0 0.0
    %1071 = vmatprep.subr.mxu0 0.0
    %1072 = vmatpush1.msra.mxu0 0.0
    %1073 = vmatprep.subr.mxu0 0.0
    %1074 = vmatpush1.msra.mxu0 0.0
    %1075 = vmatprep.mubr.f32.mxu0 0.0
    %1076 = vmatmul.mubr.f32.gmra.mrb[0].mxu0 %v988
    %v1077 = vpop.f32.mrb[0].mxu0
    %v1078 = vadd.f32 0.0, %v1077
    %v1079 = vpop.f32.mrb[0].mxu0
    %1080 = vmatprep.mubr.f32.mxu0 0.0
    %1081 = vmatmul.mubr.f32.gmra.mrb[0].mxu0 %v991
    %v1082 = vpop.f32.mrb[0].mxu0
    %v1083 = vadd.f32 0.0, %v1082
    %v1084 = vpop.f32.mrb[0].mxu0
    %1085 = vmatprep.mubr.f32.mxu0 0.0
    %1086 = vmatmul.mubr.f32.gmra.mrb[0].mxu0 %v994
    %v1087 = vpop.f32.mrb[0].mxu0
    %v1088 = vadd.f32 0.0, %v1087
    %v1089 = vpop.f32.mrb[0].mxu0
    %1090 = vmatprep.mubr.f32.mxu0 0.0
    %1091 = vmatmul.mubr.f32.gmra.mrb[0].mxu0 %v997
    %v1092 = vpop.f32.mrb[0].mxu0
    %v1093 = vadd.f32 0.0, %v1092
    %v1094 = vpop.f32.mrb[0].mxu0
    %1095 = vmatprep.mubr.f32.mxu0 0.0
    %1096 = vmatmul.mubr.f32.gmra.mrb[0].mxu0 %v1000
    %v1097 = vpop.f32.mrb[0].mxu0
    %v1098 = vadd.f32 0.0, %v1097
    %v1099 = vpop.f32.mrb[0].mxu0
    %1100 = vmatprep.mubr.f32.mxu0 0.0
    %1101 = vmatmul.mubr.f32.gmra.mrb[0].mxu0 %v1003
    %v1102 = vpop.f32.mrb[0].mxu0
    %v1103 = vadd.f32 0.0, %v1102
    %v1104 = vpop.f32.mrb[0].mxu0
    %1105 = vmatprep.mubr.f32.mxu0 0.0
    %1106 = vmatmul.mubr.f32.gmra.mrb[0].mxu0 %v1006
    %v1107 = vpop.f32.mrb[0].mxu0
    %v1108 = vadd.f32 0.0, %v1107
    %v1109 = vpop.f32.mrb[0].mxu0
    %1110 = vmatprep.mubr.f32.mxu0 0.0
    %1111 = vmatmul.mubr.f32.gmra.mrb[0].mxu0 %v1009
    %v1112 = vpop.f32.mrb[0].mxu0
    %v1113 = vadd.f32 0.0, %v1112
    %v1114 = vpop.f32.mrb[0].mxu0
    %1115 = vdwg.mxu0
    %1116 = vst [vmem:[#allocation2] sm:$0xff] %v1078
    %1117 = vst [vmem:[#allocation2 + $0x8] sm:$0xff] %v1083
    %1118 = vst [vmem:[#allocation2 + $0x10] sm:$0xff] %v1088
    %1119 = vst [vmem:[#allocation2 + $0x18] sm:$0xff] %v1093
    %1120 = vst [vmem:[#allocation2 + $0x20] sm:$0xff] %v1098
    %1121 = vst [vmem:[#allocation2 + $0x28] sm:$0xff] %v1103
    %1122 = vst [vmem:[#allocation2 + $0x30] sm:$0xff] %v1108
    %1123 = vst [vmem:[#allocation2 + $0x38] sm:$0xff] %v1113
    %v1124 = vlaneseq
    %v1125 = vshrl.u32 %v1124, 7
    %v1126 = vsub.s32 0, %v1125
    %v1127 = vrot.slane %v34, %v1126
    %v1128 = vmul.f32 %v976, %v1127
    %v1129 = vmul.f32 %v977, %v1127
    %v1130 = vmul.f32 %v978, %v1127
    %v1131 = vmul.f32 %v979, %v1127
    %v1132 = vmul.f32 %v980, %v1127
    %v1133 = vmul.f32 %v981, %v1127
    %v1134 = vmul.f32 %v982, %v1127
    %v1135 = vmul.f32 %v983, %v1127
    %v1136 = vsel %vm986, %v1128, 0.0
    %1137 = vadd.xlane.f32.xlu0 %v1136
    %v1138 = vpop.xlane.xlu0 %1137
    %v1139 = vsel %vm986, %v1129, 0.0
    %1140 = vadd.xlane.f32.xlu0 %v1139
    %v1141 = vpop.xlane.xlu0 %1140
    %v1142 = vsel %vm986, %v1130, 0.0
    %1143 = vadd.xlane.f32.xlu0 %v1142
    %v1144 = vpop.xlane.xlu0 %1143
    %v1145 = vsel %vm986, %v1131, 0.0
    %1146 = vadd.xlane.f32.xlu0 %v1145
    %v1147 = vpop.xlane.xlu0 %1146
    %v1148 = vsel %vm986, %v1132, 0.0
    %1149 = vadd.xlane.f32.xlu0 %v1148
    %v1150 = vpop.xlane.xlu0 %1149
    %v1151 = vsel %vm986, %v1133, 0.0
    %1152 = vadd.xlane.f32.xlu0 %v1151
    %v1153 = vpop.xlane.xlu0 %1152
    %v1154 = vsel %vm986, %v1134, 0.0
    %1155 = vadd.xlane.f32.xlu0 %v1154
    %v1156 = vpop.xlane.xlu0 %1155
    %v1157 = vsel %vm986, %v1135, 0.0
    %1158 = vadd.xlane.f32.xlu0 %v1157
    %v1159 = vpop.xlane.xlu0 %1158
    %v1160 = vlaneseq
    %v1161 = vshrl.u32 %v1160, 7
    %v1162 = vsub.s32 0, %v1161
    %v1163 = vrot.slane %v35, %v1162
    %v1164 = vadd.f32 %v1138, %v1163
    %v1165 = vadd.f32 %v1141, %v1163
    %v1166 = vadd.f32 %v1144, %v1163
    %v1167 = vadd.f32 %v1147, %v1163
    %v1168 = vadd.f32 %v1150, %v1163
    %v1169 = vadd.f32 %v1153, %v1163
    %v1170 = vadd.f32 %v1156, %v1163
    %v1171 = vadd.f32 %v1159, %v1163
    %1172 = vrot.lane.b32.xlu0 %v976, 32
    %v1173 = vpop.permute.xlu0 %1172
    %1174 = vrot.lane.b32.xlu0 %v977, 32
    %v1175 = vpop.permute.xlu0 %1174
    %1176 = vrot.lane.b32.xlu0 %v978, 32
    %v1177 = vpop.permute.xlu0 %1176
    %1178 = vrot.lane.b32.xlu0 %v979, 32
    %v1179 = vpop.permute.xlu0 %1178
    %1180 = vrot.lane.b32.xlu0 %v980, 32
    %v1181 = vpop.permute.xlu0 %1180
    %1182 = vrot.lane.b32.xlu0 %v981, 32
    %v1183 = vpop.permute.xlu0 %1182
    %1184 = vrot.lane.b32.xlu0 %v982, 32
    %v1185 = vpop.permute.xlu0 %1184
    %1186 = vrot.lane.b32.xlu0 %v983, 32
    %v1187 = vpop.permute.xlu0 %1186
    %1204 = vrot.lane.b32.xlu0 %v1164, 48
    %v1205 = vpop.permute.xlu0 %1204
    %1206 = vrot.lane.b32.xlu0 %v1165, 48
    %v1207 = vpop.permute.xlu0 %1206
    %1208 = vrot.lane.b32.xlu0 %v1166, 48
    %v1209 = vpop.permute.xlu0 %1208
    %1210 = vrot.lane.b32.xlu0 %v1167, 48
    %v1211 = vpop.permute.xlu0 %1210
    %1212 = vrot.lane.b32.xlu0 %v1168, 48
    %v1213 = vpop.permute.xlu0 %1212
    %1214 = vrot.lane.b32.xlu0 %v1169, 48
    %v1215 = vpop.permute.xlu0 %1214
    %1216 = vrot.lane.b32.xlu0 %v1170, 48
    %v1217 = vpop.permute.xlu0 %1216
    %1218 = vrot.lane.b32.xlu0 %v1171, 48
    %v1219 = vpop.permute.xlu0 %1218
    %v1228 = vsel %vm559, %v776, %v1173
    %v1229 = vsel %vm559, %v777, %v1175
    %v1230 = vsel %vm559, %v778, %v1177
    %v1231 = vsel %vm559, %v779, %v1179
    %v1232 = vsel %vm559, %v780, %v1181
    %v1233 = vsel %vm559, %v781, %v1183
    %v1234 = vsel %vm559, %v782, %v1185
    %v1235 = vsel %vm559, %v783, %v1187
    %vm1236 = vcmask 392192
    %v1237 = vsel %vm1236, %v1228, %v1205
    %v1238 = vsel %vm1236, %v1229, %v1207
    %v1239 = vsel %vm1236, %v1230, %v1209
    %v1240 = vsel %vm1236, %v1231, %v1211
    %v1241 = vsel %vm1236, %v1232, %v1213
    %v1242 = vsel %vm1236, %v1233, %v1215
    %v1243 = vsel %vm1236, %v1234, %v1217
    %v1244 = vsel %vm1236, %v1235, %v1219
    %vm1245 = vcmask 400384
    %v1246 = vsel %vm1245, %v1237, 0.0
    %v1247 = vsel %vm1245, %v1238, 0.0
    %v1248 = vsel %vm1245, %v1239, 0.0
    %v1249 = vsel %vm1245, %v1240, 0.0
    %v1250 = vsel %vm1245, %v1241, 0.0
    %v1251 = vsel %vm1245, %v1242, 0.0
    %v1252 = vsel %vm1245, %v1243, 0.0
    %v1253 = vsel %vm1245, %v1244, 0.0
    %1254 = vst [vmem:[%s8] sm:$0xff] %v1246
    %1255 = vst [vmem:[%s8 + $0x8] sm:$0xff] %v1247
    %1256 = vst [vmem:[%s8 + $0x10] sm:$0xff] %v1248
    %1257 = vst [vmem:[%s8 + $0x18] sm:$0xff] %v1249
    %1258 = vst [vmem:[%s8 + $0x20] sm:$0xff] %v1250
    %1259 = vst [vmem:[%s8 + $0x28] sm:$0xff] %v1251
    %1260 = vst [vmem:[%s8 + $0x30] sm:$0xff] %v1252
    %1261 = vst [vmem:[%s8 + $0x38] sm:$0xff] %v1253
    // Predicated region
    $region30: #{spfa_forward.1} parent=1 // pred_check
      _
    $region31: #{spfa_forward.1} parent=1 // pred_check_branch
      %1263 = sbr.rel (0) target = $region33
    $region32: #{spfa_forward.1} parent=1 // pred_region
      %s1265 = ssub.s32 1024, 1024
      %1266 = vsyncadd [#allocation3], %s1265
      %s1267 = sshll.u32 [#allocation2], 4
      %s1268 = int_to_ptr.vmem [resolvable:$true] %s1267
      %1273 = dma.vmem_to_hbm [thread:$0]  %s1268, 1024, %s7, [#allocation3], 128, 128, 8
    $region33: #{spfa_forward.1} parent=1 // pred_fallthru
      _
    // Predicated region
    $region34: #{spfa_forward.1} parent=1 // pred_check
      _
    $region35: #{spfa_forward.1} parent=1 // pred_check_branch
      %1275 = sbr.rel (0) target = $region37
    $region36: #{spfa_forward.1} parent=1 // pred_region
      _
    $region37: #{spfa_forward.1} parent=1 // pred_fallthru
      _
    // Predicated region
    $region38: #{spfa_forward.1} parent=1 // pred_check
      _
    $region39: #{spfa_forward.1} parent=1 // pred_check_branch
      %1277 = sbr.rel (0) target = $region41
    $region40: #{spfa_forward.1} parent=1 // pred_region
      %1278 = dma.done [#allocation3], 1024
    $region41: #{spfa_forward.1} parent=1 // pred_fallthru
      _
    // Predicated region
    $region42: #{spfa_forward.1} parent=1 // pred_check
      _
    $region43: #{spfa_forward.1} parent=1 // pred_check_branch
      %1280 = sbr.rel (0) target = $region45
    $region44: #{spfa_forward.1} parent=1 // pred_region
      _
    $region45: #{spfa_forward.1} parent=1 // pred_fallthru
      _
    %1281 = vsyncpa [#allocation3], 1

</llo_original>
